<compile_context>
chip_gen: v6e
topology: v6e:2x2x1
jax: 0.10.0
libtpu: 0.0.40
codegen_flags: <defaults>
</compile_context>

<pallas_src>
import functools

import numpy as np
import jax
import jax.numpy as jnp
from jax import lax
from jax.experimental import pallas as pl
from jax.experimental.pallas import tpu as pltpu


def _round_up(x, m):
    return (x + m - 1) // m * m


def _default_num_chunks(n_batch):
    """How many parallel grid steps to use: 1 on single-TC chips, 2 on v7x."""
    try:
        kind = jax.devices()[0].device_kind.lower()
    except Exception:
        kind = ""
    n_tc = 2 if ("v7" in kind or "7x" in kind) else 1
    nb = max(1, min(n_batch, n_tc))
    while n_batch % nb:
        nb -= 1
    return nb


def _d_kernel(x_ref, w1_ref, w2_ref, mask_ref, o_ref, col_ref, *,
              W, n_img, M, cin_p, cmid_p):
    """One batch-chunk (n_img images) per grid step.

    x_ref   : (Cin_p,  L)        input, L = n_img*H*W (batch fused into lanes)
    w1_ref  : (Cmid_p, 9*Cin_p)  conv1 weights, K = (kh*3+kw)*Cin_p + cin
    w2_ref  : (Cout_p, 9*Cmid_p) conv2 weights, same K ordering
    mask_ref: (9, C_max_p, L)    pre-broadcast 0/1 masks realizing zero pad=1
    o_ref   : (Cout_p, L)        output (lane-dense)
    col_ref : (9*C_max_p, L)     VMEM scratch holding the im2col columns
    """
    L = n_img * M
    # Flattened-index shift for each tap (dh, dw):
    #   roll(x, s, axis=1)[p] == x[(p + dh*W + dw) mod L]; for in-bounds
    #   positions this stays inside the same image's M-block, and every
    #   out-of-bounds / wrap-around position is zeroed by the tap mask.
    shifts = [(-(dh * W + dw)) % L for dh in (-1, 0, 1) for dw in (-1, 0, 1)]

    def im2col_to_scratch(a, c_p):
        # a: (c_p, L). Writes the 9 rolled+masked taps into col_ref[:9*c_p].
        for t, s in enumerate(shifts):
            if s == 0:                      # center tap: mask is all ones
                tap = a
            else:
                tap = pltpu.roll(a, s, axis=1) * mask_ref[t, :c_p, :]
            col_ref[t * c_p:(t + 1) * c_p, :] = tap

    x = x_ref[...]                                                   # (Cin_p, L)
    im2col_to_scratch(x, cin_p)
    mid = jnp.dot(w1_ref[...], col_ref[:9 * cin_p, :],
                  preferred_element_type=jnp.float32)                # (Cmid_p, L)
    mid = jnp.maximum(mid, 0.0)                                      # ReLU
    im2col_to_scratch(mid, cmid_p)
    out = jnp.dot(w2_ref[...], col_ref[:9 * cmid_p, :],
                  preferred_element_type=jnp.float32)                # (Cout_p, L)
    o_ref[...] = out.astype(o_ref.dtype)


def d_forward(x_nchw, w1_oihw, w2_oihw, *, num_chunks=None):
    """Forward of module D. x_nchw: (N, Cin, H, W) f32; w*_oihw: (O, I, 3, 3)."""
    N, Cin, H, W = x_nchw.shape
    Cmid, Cout = w1_oihw.shape[0], w2_oihw.shape[0]
    M = H * W
    Cin_p, Cmid_p, Cout_p = (_round_up(Cin, 8), _round_up(Cmid, 8),
                             _round_up(Cout, 8))
    C_max_p = max(Cin_p, Cmid_p)

    NB = _default_num_chunks(N) if num_chunks is None else num_chunks
    NC = N // NB              # images per grid step
    L = NC * M                # lane extent per grid step

    # Input: (N, Cin, H, W) -> (Cin_p, N*M); tiny (8 KB) transpose + channel pad.
    x = x_nchw.reshape(N, Cin, M).astype(jnp.float32)
    x = jnp.transpose(x, (1, 0, 2)).reshape(Cin, N * M)
    if Cin_p != Cin:
        x = jnp.pad(x, ((0, Cin_p - Cin), (0, 0)))

    # Weights (O, I, 3, 3) -> (O_p, 9*I_p); K index = (kh*3 + kw)*I_p + i.
    def pack_w(w, o_p, i_p):
        O, I = w.shape[0], w.shape[1]
        w = jnp.transpose(w, (0, 2, 3, 1)).astype(jnp.float32)       # (O, 3, 3, I)
        w = jnp.pad(w, ((0, o_p - O), (0, 0), (0, 0), (0, i_p - I)))
        return w.reshape(o_p, 9 * i_p)

    w1m = pack_w(w1_oihw, Cmid_p, Cin_p)          # (Cmid_p, 9*Cin_p)
    w2m = pack_w(w2_oihw, Cout_p, Cmid_p)         # (Cout_p, 9*Cmid_p)

    # 0/1 masks realizing zero padding=1 for each of the 9 taps, tiled across
    # the NC fused images and pre-broadcast to C_max_p sublanes (host constants).
    hh, ww = np.meshgrid(np.arange(H), np.arange(W), indexing="ij")
    per_tap = []
    for dh in (-1, 0, 1):
        for dw in (-1, 0, 1):
            m = ((hh + dh >= 0) & (hh + dh < H) &
                 (ww + dw >= 0) & (ww + dw < W)).reshape(M)
            m = np.tile(m, NC)                                       # (L,)
            per_tap.append(np.broadcast_to(m, (C_max_p, L)))
    tap_mask = jnp.asarray(np.stack(per_tap, axis=0).astype(np.float32))

    kern = functools.partial(_d_kernel, W=W, n_img=NC, M=M,
                             cin_p=Cin_p, cmid_p=Cmid_p)

    out = pl.pallas_call(
        kern,
        out_shape=jax.ShapeDtypeStruct((Cout_p, N * M), jnp.float32),
        grid_spec=pltpu.PrefetchScalarGridSpec(
            num_scalar_prefetch=0,
            grid=(NB,),
            in_specs=[
                pl.BlockSpec((Cin_p, L), lambda b: (0, b)),
                pl.BlockSpec((Cmid_p, 9 * Cin_p), lambda b: (0, 0)),
                pl.BlockSpec((Cout_p, 9 * Cmid_p), lambda b: (0, 0)),
                pl.BlockSpec((9, C_max_p, L), lambda b: (0, 0, 0)),
            ],
            out_specs=pl.BlockSpec((Cout_p, L), lambda b: (0, b)),
            scratch_shapes=[pltpu.VMEM((9 * C_max_p, L), jnp.float32)],
        ),
        compiler_params=pltpu.CompilerParams(
            dimension_semantics=("parallel",)),
    )(x, w1m, w2m, tap_mask)

    # (Cout_p, N*M) -> (N, Cout, H, W): tiny transpose + slice off channel pad.
    out = out.reshape(Cout_p, N, M)
    out = jnp.transpose(out, (1, 0, 2))[:, :Cout, :]
    return out.reshape(N, Cout, H, W)


def _reference(x, w1, w2):
    dn = ("NCHW", "OIHW", "NCHW")
    y = lax.conv_general_dilated(x, w1, (1, 1), ((1, 1), (1, 1)),
                                 dimension_numbers=dn,
                                 precision=lax.Precision.HIGHEST)
    y = jnp.maximum(y, 0.0)
    y = lax.conv_general_dilated(y, w2, (1, 1), ((1, 1), (1, 1)),
                                 dimension_numbers=dn,
                                 precision=lax.Precision.HIGHEST)
    return y


if __name__ == "__main__":
    # Small shapes consistent with the module's forward.
    N, Cin, Cmid, Cout, H, W = 2, 4, 8, 4, 16, 16

    key = jax.random.PRNGKey(0)
    kx, k1, k2 = jax.random.split(key, 3)

    x = jax.random.normal(kx, (N, Cin, H, W), dtype=jnp.float32)

    # Deterministic 'kaiming_normal' (fan_in) style init scaled by gain=0.2,
    # matching Conv2d(..., 3, bias=False) weight shapes.
    std1 = (2.0 / (Cin * 3 * 3)) ** 0.5
    std2 = (2.0 / (Cmid * 3 * 3)) ** 0.5
    w1 = jax.random.normal(k1, (Cmid, Cin, 3, 3), dtype=jnp.float32) * std1 * 0.2
    w2 = jax.random.normal(k2, (Cout, Cmid, 3, 3), dtype=jnp.float32) * std2 * 0.2

    out = jax.jit(d_forward)(x, w1, w2)
    jax.block_until_ready(out)
    assert out.shape == (N, Cout, H, W)

    # Pure-JAX reference check (catches any layout / shift / mask error).
    ref = _reference(x, w1, w2)
    max_err = float(jnp.max(jnp.abs(out - ref)))
    assert jnp.allclose(out, ref, atol=1e-3, rtol=1e-2), f"max abs err {max_err}"

    print("KERNEL_OK")
</pallas_src>

<mosaic_0001>
module attributes {stable_mosaic.version = 11 : i64} {
  func.func @_d_kernel(%arg0: i32, %arg1: memref<8x512xf32, #tpu.memory_space<vmem>>, %arg2: memref<8x72xf32, #tpu.memory_space<vmem>>, %arg3: memref<8x72xf32, #tpu.memory_space<vmem>>, %arg4: memref<9x8x512xf32, #tpu.memory_space<vmem>>, %arg5: memref<8x512xf32, #tpu.memory_space<vmem>>, %arg6: memref<72x512xf32, #tpu.memory_space<vmem>>) attributes {dimension_semantics = [#tpu.dimension_semantics<parallel>], iteration_bounds = array<i64: 1>, scalar_prefetch = 0 : i64, scratch_operands = 1 : i64, tpu.core_type = #tpu.core_type<tc>, window_params = [{transform_indices = @transform_0, window_bounds = array<i64: 8, 512>}, {pipeline_mode = #tpu.pipeline_mode<synchronous>, transform_indices = @transform_1, window_bounds = array<i64: 8, 72>}, {pipeline_mode = #tpu.pipeline_mode<synchronous>, transform_indices = @transform_2, window_bounds = array<i64: 8, 72>}, {pipeline_mode = #tpu.pipeline_mode<synchronous>, transform_indices = @transform_3, window_bounds = array<i64: 9, 8, 512>}, {transform_indices = @transform_4, window_bounds = array<i64: 8, 512>}]} {
    %c0 = arith.constant 0 : index
    %c0_0 = arith.constant 0 : index
    %0 = vector.load %arg1[%c0, %c0_0] : memref<8x512xf32, #tpu.memory_space<vmem>>, vector<8x512xf32>
    %c17_i32 = arith.constant 17 : i32
    %1 = tpu.dynamic_rotate %0 by %c17_i32 dim 1 : vector<8x512xf32>, i32 -> vector<8x512xf32>
    %c0_1 = arith.constant 0 : index
    %c0_2 = arith.constant 0 : index
    %c0_3 = arith.constant 0 : index
    %2 = vector.load %arg4[%c0_1, %c0_2, %c0_3] : memref<9x8x512xf32, #tpu.memory_space<vmem>>, vector<1x8x512xf32>
    %3 = vector.shape_cast %2 : vector<1x8x512xf32> to vector<8x512xf32>
    %4 = arith.mulf %1, %3 : vector<8x512xf32>
    %c0_4 = arith.constant 0 : index
    %c0_5 = arith.constant 0 : index
    %5 = vector.load %arg6[%c0_4, %c0_5] : memref<72x512xf32, #tpu.memory_space<vmem>>, vector<8x512xf32>
    tpu.vector_store %arg6[%c0_4, %c0_5], %4 {strides = array<i32>} : memref<72x512xf32, #tpu.memory_space<vmem>>, vector<8x512xf32>,
    %c16_i32 = arith.constant 16 : i32
    %6 = tpu.dynamic_rotate %0 by %c16_i32 dim 1 : vector<8x512xf32>, i32 -> vector<8x512xf32>
    %c1 = arith.constant 1 : index
    %c0_6 = arith.constant 0 : index
    %c0_7 = arith.constant 0 : index
    %7 = vector.load %arg4[%c1, %c0_6, %c0_7] : memref<9x8x512xf32, #tpu.memory_space<vmem>>, vector<1x8x512xf32>
    %8 = vector.shape_cast %7 : vector<1x8x512xf32> to vector<8x512xf32>
    %9 = arith.mulf %6, %8 : vector<8x512xf32>
    %c8 = arith.constant 8 : index
    %c0_8 = arith.constant 0 : index
    %10 = vector.load %arg6[%c8, %c0_8] : memref<72x512xf32, #tpu.memory_space<vmem>>, vector<8x512xf32>
    tpu.vector_store %arg6[%c8, %c0_8], %9 {strides = array<i32>} : memref<72x512xf32, #tpu.memory_space<vmem>>, vector<8x512xf32>,
    %c15_i32 = arith.constant 15 : i32
    %11 = tpu.dynamic_rotate %0 by %c15_i32 dim 1 : vector<8x512xf32>, i32 -> vector<8x512xf32>
    %c2 = arith.constant 2 : index
    %c0_9 = arith.constant 0 : index
    %c0_10 = arith.constant 0 : index
    %12 = vector.load %arg4[%c2, %c0_9, %c0_10] : memref<9x8x512xf32, #tpu.memory_space<vmem>>, vector<1x8x512xf32>
    %13 = vector.shape_cast %12 : vector<1x8x512xf32> to vector<8x512xf32>
    %14 = arith.mulf %11, %13 : vector<8x512xf32>
    %c16 = arith.constant 16 : index
    %c0_11 = arith.constant 0 : index
    %15 = vector.load %arg6[%c16, %c0_11] : memref<72x512xf32, #tpu.memory_space<vmem>>, vector<8x512xf32>
    tpu.vector_store %arg6[%c16, %c0_11], %14 {strides = array<i32>} : memref<72x512xf32, #tpu.memory_space<vmem>>, vector<8x512xf32>,
    %c1_i32 = arith.constant 1 : i32
    %16 = tpu.dynamic_rotate %0 by %c1_i32 dim 1 : vector<8x512xf32>, i32 -> vector<8x512xf32>
    %c3 = arith.constant 3 : index
    %c0_12 = arith.constant 0 : index
    %c0_13 = arith.constant 0 : index
    %17 = vector.load %arg4[%c3, %c0_12, %c0_13] : memref<9x8x512xf32, #tpu.memory_space<vmem>>, vector<1x8x512xf32>
    %18 = vector.shape_cast %17 : vector<1x8x512xf32> to vector<8x512xf32>
    %19 = arith.mulf %16, %18 : vector<8x512xf32>
    %c24 = arith.constant 24 : index
    %c0_14 = arith.constant 0 : index
    %20 = vector.load %arg6[%c24, %c0_14] : memref<72x512xf32, #tpu.memory_space<vmem>>, vector<8x512xf32>
    tpu.vector_store %arg6[%c24, %c0_14], %19 {strides = array<i32>} : memref<72x512xf32, #tpu.memory_space<vmem>>, vector<8x512xf32>,
    %c32 = arith.constant 32 : index
    %c0_15 = arith.constant 0 : index
    %21 = vector.load %arg6[%c32, %c0_15] : memref<72x512xf32, #tpu.memory_space<vmem>>, vector<8x512xf32>
    tpu.vector_store %arg6[%c32, %c0_15], %0 {strides = array<i32>} : memref<72x512xf32, #tpu.memory_space<vmem>>, vector<8x512xf32>,
    %c511_i32 = arith.constant 511 : i32
    %22 = tpu.dynamic_rotate %0 by %c511_i32 dim 1 : vector<8x512xf32>, i32 -> vector<8x512xf32>
    %c5 = arith.constant 5 : index
    %c0_16 = arith.constant 0 : index
    %c0_17 = arith.constant 0 : index
    %23 = vector.load %arg4[%c5, %c0_16, %c0_17] : memref<9x8x512xf32, #tpu.memory_space<vmem>>, vector<1x8x512xf32>
    %24 = vector.shape_cast %23 : vector<1x8x512xf32> to vector<8x512xf32>
    %25 = arith.mulf %22, %24 : vector<8x512xf32>
    %c40 = arith.constant 40 : index
    %c0_18 = arith.constant 0 : index
    %26 = vector.load %arg6[%c40, %c0_18] : memref<72x512xf32, #tpu.memory_space<vmem>>, vector<8x512xf32>
    tpu.vector_store %arg6[%c40, %c0_18], %25 {strides = array<i32>} : memref<72x512xf32, #tpu.memory_space<vmem>>, vector<8x512xf32>,
    %c497_i32 = arith.constant 497 : i32
    %27 = tpu.dynamic_rotate %0 by %c497_i32 dim 1 : vector<8x512xf32>, i32 -> vector<8x512xf32>
    %c6 = arith.constant 6 : index
    %c0_19 = arith.constant 0 : index
    %c0_20 = arith.constant 0 : index
    %28 = vector.load %arg4[%c6, %c0_19, %c0_20] : memref<9x8x512xf32, #tpu.memory_space<vmem>>, vector<1x8x512xf32>
    %29 = vector.shape_cast %28 : vector<1x8x512xf32> to vector<8x512xf32>
    %30 = arith.mulf %27, %29 : vector<8x512xf32>
    %c48 = arith.constant 48 : index
    %c0_21 = arith.constant 0 : index
    %31 = vector.load %arg6[%c48, %c0_21] : memref<72x512xf32, #tpu.memory_space<vmem>>, vector<8x512xf32>
    tpu.vector_store %arg6[%c48, %c0_21], %30 {strides = array<i32>} : memref<72x512xf32, #tpu.memory_space<vmem>>, vector<8x512xf32>,
    %c496_i32 = arith.constant 496 : i32
    %32 = tpu.dynamic_rotate %0 by %c496_i32 dim 1 : vector<8x512xf32>, i32 -> vector<8x512xf32>
    %c7 = arith.constant 7 : index
    %c0_22 = arith.constant 0 : index
    %c0_23 = arith.constant 0 : index
    %33 = vector.load %arg4[%c7, %c0_22, %c0_23] : memref<9x8x512xf32, #tpu.memory_space<vmem>>, vector<1x8x512xf32>
    %34 = vector.shape_cast %33 : vector<1x8x512xf32> to vector<8x512xf32>
    %35 = arith.mulf %32, %34 : vector<8x512xf32>
    %c56 = arith.constant 56 : index
    %c0_24 = arith.constant 0 : index
    %36 = vector.load %arg6[%c56, %c0_24] : memref<72x512xf32, #tpu.memory_space<vmem>>, vector<8x512xf32>
    tpu.vector_store %arg6[%c56, %c0_24], %35 {strides = array<i32>} : memref<72x512xf32, #tpu.memory_space<vmem>>, vector<8x512xf32>,
    %c495_i32 = arith.constant 495 : i32
    %37 = tpu.dynamic_rotate %0 by %c495_i32 dim 1 : vector<8x512xf32>, i32 -> vector<8x512xf32>
    %c8_25 = arith.constant 8 : index
    %c0_26 = arith.constant 0 : index
    %c0_27 = arith.constant 0 : index
    %38 = vector.load %arg4[%c8_25, %c0_26, %c0_27] : memref<9x8x512xf32, #tpu.memory_space<vmem>>, vector<1x8x512xf32>
    %39 = vector.shape_cast %38 : vector<1x8x512xf32> to vector<8x512xf32>
    %40 = arith.mulf %37, %39 : vector<8x512xf32>
    %c64 = arith.constant 64 : index
    %c0_28 = arith.constant 0 : index
    %41 = vector.load %arg6[%c64, %c0_28] : memref<72x512xf32, #tpu.memory_space<vmem>>, vector<8x512xf32>
    tpu.vector_store %arg6[%c64, %c0_28], %40 {strides = array<i32>} : memref<72x512xf32, #tpu.memory_space<vmem>>, vector<8x512xf32>,
    %c0_29 = arith.constant 0 : index
    %c0_30 = arith.constant 0 : index
    %42 = vector.load %arg2[%c0_29, %c0_30] : memref<8x72xf32, #tpu.memory_space<vmem>>, vector<8x72xf32>
    %c0_31 = arith.constant 0 : index
    %c0_32 = arith.constant 0 : index
    %43 = vector.load %arg6[%c0_31, %c0_32] : memref<72x512xf32, #tpu.memory_space<vmem>>, vector<72x512xf32>
    %cst = arith.constant dense<0.000000e+00> : vector<8x512xf32>
    %44 = tpu.matmul %42, %43, %cst {dimension_numbers = #tpu.dot_dimension_numbers<[1], [0], [0], [1], [0, 0, 1, 1], [], []>} : vector<8x72xf32>, vector<72x512xf32>, vector<8x512xf32> -> vector<8x512xf32>
    %cst_33 = arith.constant 0.000000e+00 : f32
    %45 = vector.broadcast %cst_33 : f32 to vector<8x512xf32>
    %46 = arith.maximumf %44, %45 : vector<8x512xf32>
    %c17_i32_34 = arith.constant 17 : i32
    %47 = tpu.dynamic_rotate %46 by %c17_i32_34 dim 1 : vector<8x512xf32>, i32 -> vector<8x512xf32>
    %c0_35 = arith.constant 0 : index
    %c0_36 = arith.constant 0 : index
    %c0_37 = arith.constant 0 : index
    %48 = vector.load %arg4[%c0_35, %c0_36, %c0_37] : memref<9x8x512xf32, #tpu.memory_space<vmem>>, vector<1x8x512xf32>
    %49 = vector.shape_cast %48 : vector<1x8x512xf32> to vector<8x512xf32>
    %50 = arith.mulf %47, %49 : vector<8x512xf32>
    %c0_38 = arith.constant 0 : index
    %c0_39 = arith.constant 0 : index
    %51 = vector.load %arg6[%c0_38, %c0_39] : memref<72x512xf32, #tpu.memory_space<vmem>>, vector<8x512xf32>
    tpu.vector_store %arg6[%c0_38, %c0_39], %50 {strides = array<i32>} : memref<72x512xf32, #tpu.memory_space<vmem>>, vector<8x512xf32>,
    %c16_i32_40 = arith.constant 16 : i32
    %52 = tpu.dynamic_rotate %46 by %c16_i32_40 dim 1 : vector<8x512xf32>, i32 -> vector<8x512xf32>
    %c1_41 = arith.constant 1 : index
    %c0_42 = arith.constant 0 : index
    %c0_43 = arith.constant 0 : index
    %53 = vector.load %arg4[%c1_41, %c0_42, %c0_43] : memref<9x8x512xf32, #tpu.memory_space<vmem>>, vector<1x8x512xf32>
    %54 = vector.shape_cast %53 : vector<1x8x512xf32> to vector<8x512xf32>
    %55 = arith.mulf %52, %54 : vector<8x512xf32>
    %c8_44 = arith.constant 8 : index
    %c0_45 = arith.constant 0 : index
    %56 = vector.load %arg6[%c8_44, %c0_45] : memref<72x512xf32, #tpu.memory_space<vmem>>, vector<8x512xf32>
    tpu.vector_store %arg6[%c8_44, %c0_45], %55 {strides = array<i32>} : memref<72x512xf32, #tpu.memory_space<vmem>>, vector<8x512xf32>,
    %c15_i32_46 = arith.constant 15 : i32
    %57 = tpu.dynamic_rotate %46 by %c15_i32_46 dim 1 : vector<8x512xf32>, i32 -> vector<8x512xf32>
    %c2_47 = arith.constant 2 : index
    %c0_48 = arith.constant 0 : index
    %c0_49 = arith.constant 0 : index
    %58 = vector.load %arg4[%c2_47, %c0_48, %c0_49] : memref<9x8x512xf32, #tpu.memory_space<vmem>>, vector<1x8x512xf32>
    %59 = vector.shape_cast %58 : vector<1x8x512xf32> to vector<8x512xf32>
    %60 = arith.mulf %57, %59 : vector<8x512xf32>
    %c16_50 = arith.constant 16 : index
    %c0_51 = arith.constant 0 : index
    %61 = vector.load %arg6[%c16_50, %c0_51] : memref<72x512xf32, #tpu.memory_space<vmem>>, vector<8x512xf32>
    tpu.vector_store %arg6[%c16_50, %c0_51], %60 {strides = array<i32>} : memref<72x512xf32, #tpu.memory_space<vmem>>, vector<8x512xf32>,
    %c1_i32_52 = arith.constant 1 : i32
    %62 = tpu.dynamic_rotate %46 by %c1_i32_52 dim 1 : vector<8x512xf32>, i32 -> vector<8x512xf32>
    %c3_53 = arith.constant 3 : index
    %c0_54 = arith.constant 0 : index
    %c0_55 = arith.constant 0 : index
    %63 = vector.load %arg4[%c3_53, %c0_54, %c0_55] : memref<9x8x512xf32, #tpu.memory_space<vmem>>, vector<1x8x512xf32>
    %64 = vector.shape_cast %63 : vector<1x8x512xf32> to vector<8x512xf32>
    %65 = arith.mulf %62, %64 : vector<8x512xf32>
    %c24_56 = arith.constant 24 : index
    %c0_57 = arith.constant 0 : index
    %66 = vector.load %arg6[%c24_56, %c0_57] : memref<72x512xf32, #tpu.memory_space<vmem>>, vector<8x512xf32>
    tpu.vector_store %arg6[%c24_56, %c0_57], %65 {strides = array<i32>} : memref<72x512xf32, #tpu.memory_space<vmem>>, vector<8x512xf32>,
    %c32_58 = arith.constant 32 : index
    %c0_59 = arith.constant 0 : index
    %67 = vector.load %arg6[%c32_58, %c0_59] : memref<72x512xf32, #tpu.memory_space<vmem>>, vector<8x512xf32>
    tpu.vector_store %arg6[%c32_58, %c0_59], %46 {strides = array<i32>} : memref<72x512xf32, #tpu.memory_space<vmem>>, vector<8x512xf32>,
    %c511_i32_60 = arith.constant 511 : i32
    %68 = tpu.dynamic_rotate %46 by %c511_i32_60 dim 1 : vector<8x512xf32>, i32 -> vector<8x512xf32>
    %c5_61 = arith.constant 5 : index
    %c0_62 = arith.constant 0 : index
    %c0_63 = arith.constant 0 : index
    %69 = vector.load %arg4[%c5_61, %c0_62, %c0_63] : memref<9x8x512xf32, #tpu.memory_space<vmem>>, vector<1x8x512xf32>
    %70 = vector.shape_cast %69 : vector<1x8x512xf32> to vector<8x512xf32>
    %71 = arith.mulf %68, %70 : vector<8x512xf32>
    %c40_64 = arith.constant 40 : index
    %c0_65 = arith.constant 0 : index
    %72 = vector.load %arg6[%c40_64, %c0_65] : memref<72x512xf32, #tpu.memory_space<vmem>>, vector<8x512xf32>
    tpu.vector_store %arg6[%c40_64, %c0_65], %71 {strides = array<i32>} : memref<72x512xf32, #tpu.memory_space<vmem>>, vector<8x512xf32>,
    %c497_i32_66 = arith.constant 497 : i32
    %73 = tpu.dynamic_rotate %46 by %c497_i32_66 dim 1 : vector<8x512xf32>, i32 -> vector<8x512xf32>
    %c6_67 = arith.constant 6 : index
    %c0_68 = arith.constant 0 : index
    %c0_69 = arith.constant 0 : index
    %74 = vector.load %arg4[%c6_67, %c0_68, %c0_69] : memref<9x8x512xf32, #tpu.memory_space<vmem>>, vector<1x8x512xf32>
    %75 = vector.shape_cast %74 : vector<1x8x512xf32> to vector<8x512xf32>
    %76 = arith.mulf %73, %75 : vector<8x512xf32>
    %c48_70 = arith.constant 48 : index
    %c0_71 = arith.constant 0 : index
    %77 = vector.load %arg6[%c48_70, %c0_71] : memref<72x512xf32, #tpu.memory_space<vmem>>, vector<8x512xf32>
    tpu.vector_store %arg6[%c48_70, %c0_71], %76 {strides = array<i32>} : memref<72x512xf32, #tpu.memory_space<vmem>>, vector<8x512xf32>,
    %c496_i32_72 = arith.constant 496 : i32
    %78 = tpu.dynamic_rotate %46 by %c496_i32_72 dim 1 : vector<8x512xf32>, i32 -> vector<8x512xf32>
    %c7_73 = arith.constant 7 : index
    %c0_74 = arith.constant 0 : index
    %c0_75 = arith.constant 0 : index
    %79 = vector.load %arg4[%c7_73, %c0_74, %c0_75] : memref<9x8x512xf32, #tpu.memory_space<vmem>>, vector<1x8x512xf32>
    %80 = vector.shape_cast %79 : vector<1x8x512xf32> to vector<8x512xf32>
    %81 = arith.mulf %78, %80 : vector<8x512xf32>
    %c56_76 = arith.constant 56 : index
    %c0_77 = arith.constant 0 : index
    %82 = vector.load %arg6[%c56_76, %c0_77] : memref<72x512xf32, #tpu.memory_space<vmem>>, vector<8x512xf32>
    tpu.vector_store %arg6[%c56_76, %c0_77], %81 {strides = array<i32>} : memref<72x512xf32, #tpu.memory_space<vmem>>, vector<8x512xf32>,
    %c495_i32_78 = arith.constant 495 : i32
    %83 = tpu.dynamic_rotate %46 by %c495_i32_78 dim 1 : vector<8x512xf32>, i32 -> vector<8x512xf32>
    %c8_79 = arith.constant 8 : index
    %c0_80 = arith.constant 0 : index
    %c0_81 = arith.constant 0 : index
    %84 = vector.load %arg4[%c8_79, %c0_80, %c0_81] : memref<9x8x512xf32, #tpu.memory_space<vmem>>, vector<1x8x512xf32>
    %85 = vector.shape_cast %84 : vector<1x8x512xf32> to vector<8x512xf32>
    %86 = arith.mulf %83, %85 : vector<8x512xf32>
    %c64_82 = arith.constant 64 : index
    %c0_83 = arith.constant 0 : index
    %87 = vector.load %arg6[%c64_82, %c0_83] : memref<72x512xf32, #tpu.memory_space<vmem>>, vector<8x512xf32>
    tpu.vector_store %arg6[%c64_82, %c0_83], %86 {strides = array<i32>} : memref<72x512xf32, #tpu.memory_space<vmem>>, vector<8x512xf32>,
    %c0_84 = arith.constant 0 : index
    %c0_85 = arith.constant 0 : index
    %88 = vector.load %arg3[%c0_84, %c0_85] : memref<8x72xf32, #tpu.memory_space<vmem>>, vector<8x72xf32>
    %c0_86 = arith.constant 0 : index
    %c0_87 = arith.constant 0 : index
    %89 = vector.load %arg6[%c0_86, %c0_87] : memref<72x512xf32, #tpu.memory_space<vmem>>, vector<72x512xf32>
    %cst_88 = arith.constant dense<0.000000e+00> : vector<8x512xf32>
    %90 = tpu.matmul %88, %89, %cst_88 {dimension_numbers = #tpu.dot_dimension_numbers<[1], [0], [0], [1], [0, 0, 1, 1], [], []>} : vector<8x72xf32>, vector<72x512xf32>, vector<8x512xf32> -> vector<8x512xf32>
    %c0_89 = arith.constant 0 : index
    %c0_90 = arith.constant 0 : index
    %91 = vector.load %arg5[%c0_89, %c0_90] : memref<8x512xf32, #tpu.memory_space<vmem>>, vector<8x512xf32>
    tpu.vector_store %arg5[%c0_89, %c0_90], %90 {strides = array<i32>} : memref<8x512xf32, #tpu.memory_space<vmem>>, vector<8x512xf32>,
    return
  }
  func.func @transform_0(%arg0: i32) -> (i32, i32) {
    %c0_i32 = arith.constant 0 : i32
    %c0_i32_0 = arith.constant 0 : i32
    return %c0_i32, %arg0 : i32, i32
  }
  func.func @transform_1(%arg0: i32) -> (i32, i32) {
    %c0_i32 = arith.constant 0 : i32
    %c0_i32_0 = arith.constant 0 : i32
    %c0_i32_1 = arith.constant 0 : i32
    return %c0_i32, %c0_i32_0 : i32, i32
  }
  func.func @transform_2(%arg0: i32) -> (i32, i32) {
    %c0_i32 = arith.constant 0 : i32
    %c0_i32_0 = arith.constant 0 : i32
    %c0_i32_1 = arith.constant 0 : i32
    return %c0_i32, %c0_i32_0 : i32, i32
  }
  func.func @transform_3(%arg0: i32) -> (i32, i32, i32) {
    %c0_i32 = arith.constant 0 : i32
    %c0_i32_0 = arith.constant 0 : i32
    %c0_i32_1 = arith.constant 0 : i32
    %c0_i32_2 = arith.constant 0 : i32
    return %c0_i32, %c0_i32_0, %c0_i32_1 : i32, i32, i32
  }
  func.func @transform_4(%arg0: i32) -> (i32, i32) {
    %c0_i32 = arith.constant 0 : i32
    %c0_i32_0 = arith.constant 0 : i32
    return %c0_i32, %arg0 : i32, i32
  }
}

</mosaic_0001>

<llo_original>
// kernel: d_forward.1
$region0: #{d_forward.1}
  #allocation0 [shape = 'u32[]', space=smem, size = 0x4, offset = 0x4, fixed_abs, tag = 'smem constant byte address 0x4 - core index']
  #allocation1 [shape = 'u32[144,128]{1,0:T(1,128)}', space=vmem, size = 0x12000, scoped, tag = 'internal scratch']
  #allocation2 [shape = 'f32[72,512]{1,0:T(8,128)}', space=vmem, size = 0x24000, scoped, tag = 'scratch operand']
  %s0 = inlined_call_operand.vmem [shape: f32[8,512], index: 0, kind: input, shape index: {}]
  %s1 = inlined_call_operand.vmem [shape: f32[8,72], index: 1, kind: input, shape index: {}]
  %s2 = inlined_call_operand.vmem [shape: f32[8,72], index: 2, kind: input, shape index: {}]
  %s3 = inlined_call_operand.vmem [shape: f32[9,8,512], index: 3, kind: input, shape index: {}]
  %s4 = inlined_call_operand.vmem [shape: f32[8,512], index: 4, kind: output, shape index: {}]
  %s5 = sld [smem:[#allocation0]]
  $region26: #{d_forward.1} parent=0
    _
  %s7 = ssub.s32 1, %s5
  %s8 = scalar_select 0, %s7, %s5
  // Predicated region
  $region2: #{d_forward.1} parent=0 // pred_check
    _
  $region3: #{d_forward.1} parent=0 // pred_check_branch
    %10 = sbr.rel (0) target = $region5
  $region4: #{d_forward.1} parent=0 // pred_region
    _
  $region5: #{d_forward.1} parent=0 // pred_fallthru
    _
  // Predicated region
  $region6: #{d_forward.1} parent=0 // pred_check
    _
  $region7: #{d_forward.1} parent=0 // pred_check_branch
    %12 = sbr.rel (0) target = $region9
  $region8: #{d_forward.1} parent=0 // pred_region
    _
  $region9: #{d_forward.1} parent=0 // pred_fallthru
    _
  // Predicated region
  $region10: #{d_forward.1} parent=0 // pred_check
    _
  $region11: #{d_forward.1} parent=0 // pred_check_branch
    %14 = sbr.rel (0) target = $region13
  $region12: #{d_forward.1} parent=0 // pred_region
    _
  $region13: #{d_forward.1} parent=0 // pred_fallthru
    _
  // Predicated region
  $region14: #{d_forward.1} parent=0 // pred_check
    _
  $region15: #{d_forward.1} parent=0 // pred_check_branch
    %16 = sbr.rel (0) target = $region17
  $region16: #{d_forward.1} parent=0 // pred_region
    _
  $region17: #{d_forward.1} parent=0 // pred_fallthru
    _
  %v17 = vld [vmem:[%s0] sm:$0xff]
  %v18 = vld [vmem:[%s0 + $0x8] sm:$0xff]
  %v19 = vld [vmem:[%s0 + $0x10] sm:$0xff]
  %v20 = vld [vmem:[%s0 + $0x18] sm:$0xff]
  %21 = vrot.lane.b32.xlu0 %v17, 17
  %v22 = vpop.permute.xlu0 %21
  %23 = vrot.lane.b32.xlu0 %v18, 17
  %v24 = vpop.permute.xlu0 %23
  %25 = vrot.lane.b32.xlu0 %v19, 17
  %v26 = vpop.permute.xlu0 %25
  %27 = vrot.lane.b32.xlu0 %v20, 17
  %v28 = vpop.permute.xlu0 %27
  %v29 = vlaneseq
  %v30 = vand.u32 %v29, 127
  %vm31 = vcmp.lt.s32.totalorder %v30, 17
  %v32 = vsel %vm31, %v26, %v28
  %v33 = vsel %vm31, %v24, %v26
  %v34 = vsel %vm31, %v22, %v24
  %v35 = vsel %vm31, %v28, %v22
  %v36 = vld [vmem:[%s3] sm:$0xff]
  %v37 = vld [vmem:[%s3 + $0x8] sm:$0xff]
  %v38 = vld [vmem:[%s3 + $0x10] sm:$0xff]
  %v39 = vld [vmem:[%s3 + $0x18] sm:$0xff]
  %v40 = vmul.f32 %v35, %v36
  %v41 = vmul.f32 %v34, %v37
  %v42 = vmul.f32 %v33, %v38
  %v43 = vmul.f32 %v32, %v39
  %44 = vst [vmem:[#allocation2] sm:$0xff] %v40
  %45 = vst [vmem:[#allocation2 + $0x8] sm:$0xff] %v41
  %46 = vst [vmem:[#allocation2 + $0x10] sm:$0xff] %v42
  %47 = vst [vmem:[#allocation2 + $0x18] sm:$0xff] %v43
  %48 = vrot.lane.b32.xlu0 %v17, 16
  %v49 = vpop.permute.xlu0 %48
  %50 = vrot.lane.b32.xlu0 %v18, 16
  %v51 = vpop.permute.xlu0 %50
  %52 = vrot.lane.b32.xlu0 %v19, 16
  %v53 = vpop.permute.xlu0 %52
  %54 = vrot.lane.b32.xlu0 %v20, 16
  %v55 = vpop.permute.xlu0 %54
  %vm56 = vcmp.lt.s32.totalorder %v30, 16
  %v57 = vsel %vm56, %v53, %v55
  %v58 = vsel %vm56, %v51, %v53
  %v59 = vsel %vm56, %v49, %v51
  %v60 = vsel %vm56, %v55, %v49
  %s61 = scalar_lea.vmem %s3, 32
  %v62 = vld [vmem:[%s61] sm:$0xff]
  %v63 = vld [vmem:[%s61 + $0x8] sm:$0xff]
  %v64 = vld [vmem:[%s61 + $0x10] sm:$0xff]
  %v65 = vld [vmem:[%s61 + $0x18] sm:$0xff]
  %v66 = vmul.f32 %v60, %v62
  %v67 = vmul.f32 %v59, %v63
  %v68 = vmul.f32 %v58, %v64
  %v69 = vmul.f32 %v57, %v65
  %70 = vst [vmem:[#allocation2 + $0x20] sm:$0xff] %v66
  %71 = vst [vmem:[#allocation2 + $0x28] sm:$0xff] %v67
  %72 = vst [vmem:[#allocation2 + $0x30] sm:$0xff] %v68
  %73 = vst [vmem:[#allocation2 + $0x38] sm:$0xff] %v69
  %74 = vrot.lane.b32.xlu0 %v17, 15
  %v75 = vpop.permute.xlu0 %74
  %76 = vrot.lane.b32.xlu0 %v18, 15
  %v77 = vpop.permute.xlu0 %76
  %78 = vrot.lane.b32.xlu0 %v19, 15
  %v79 = vpop.permute.xlu0 %78
  %80 = vrot.lane.b32.xlu0 %v20, 15
  %v81 = vpop.permute.xlu0 %80
  %vm82 = vcmp.lt.s32.totalorder %v30, 15
  %v83 = vsel %vm82, %v79, %v81
  %v84 = vsel %vm82, %v77, %v79
  %v85 = vsel %vm82, %v75, %v77
  %v86 = vsel %vm82, %v81, %v75
  %s87 = scalar_lea.vmem %s3, 64
  %v88 = vld [vmem:[%s87] sm:$0xff]
  %v89 = vld [vmem:[%s87 + $0x8] sm:$0xff]
  %v90 = vld [vmem:[%s87 + $0x10] sm:$0xff]
  %v91 = vld [vmem:[%s87 + $0x18] sm:$0xff]
  %v92 = vmul.f32 %v86, %v88
  %v93 = vmul.f32 %v85, %v89
  %v94 = vmul.f32 %v84, %v90
  %v95 = vmul.f32 %v83, %v91
  %96 = vst [vmem:[#allocation2 + $0x40] sm:$0xff] %v92
  %97 = vst [vmem:[#allocation2 + $0x48] sm:$0xff] %v93
  %98 = vst [vmem:[#allocation2 + $0x50] sm:$0xff] %v94
  %99 = vst [vmem:[#allocation2 + $0x58] sm:$0xff] %v95
  %100 = vrot.lane.b32.xlu0 %v17, 1
  %v101 = vpop.permute.xlu0 %100
  %102 = vrot.lane.b32.xlu0 %v18, 1
  %v103 = vpop.permute.xlu0 %102
  %104 = vrot.lane.b32.xlu0 %v19, 1
  %v105 = vpop.permute.xlu0 %104
  %106 = vrot.lane.b32.xlu0 %v20, 1
  %v107 = vpop.permute.xlu0 %106
  %vm108 = vcmp.lt.s32.totalorder %v30, 1
  %v109 = vsel %vm108, %v105, %v107
  %v110 = vsel %vm108, %v103, %v105
  %v111 = vsel %vm108, %v101, %v103
  %v112 = vsel %vm108, %v107, %v101
  %s113 = scalar_lea.vmem %s3, 96
  %v114 = vld [vmem:[%s113] sm:$0xff]
  %v115 = vld [vmem:[%s113 + $0x8] sm:$0xff]
  %v116 = vld [vmem:[%s113 + $0x10] sm:$0xff]
  %v117 = vld [vmem:[%s113 + $0x18] sm:$0xff]
  %v118 = vmul.f32 %v112, %v114
  %v119 = vmul.f32 %v111, %v115
  %v120 = vmul.f32 %v110, %v116
  %v121 = vmul.f32 %v109, %v117
  %122 = vst [vmem:[#allocation2 + $0x60] sm:$0xff] %v118
  %123 = vst [vmem:[#allocation2 + $0x68] sm:$0xff] %v119
  %124 = vst [vmem:[#allocation2 + $0x70] sm:$0xff] %v120
  %125 = vst [vmem:[#allocation2 + $0x78] sm:$0xff] %v121
  %126 = vst [vmem:[#allocation2 + $0x80] sm:$0xff] %v17
  %127 = vst [vmem:[#allocation2 + $0x88] sm:$0xff] %v18
  %128 = vst [vmem:[#allocation2 + $0x90] sm:$0xff] %v19
  %129 = vst [vmem:[#allocation2 + $0x98] sm:$0xff] %v20
  %130 = vrot.lane.b32.xlu0 %v17, 127
  %v131 = vpop.permute.xlu0 %130
  %132 = vrot.lane.b32.xlu0 %v18, 127
  %v133 = vpop.permute.xlu0 %132
  %134 = vrot.lane.b32.xlu0 %v19, 127
  %v135 = vpop.permute.xlu0 %134
  %136 = vrot.lane.b32.xlu0 %v20, 127
  %v137 = vpop.permute.xlu0 %136
  %vm138 = vcmp.lt.s32.totalorder %v30, 127
  %v139 = vsel %vm138, %v135, %v137
  %v140 = vsel %vm138, %v133, %v135
  %v141 = vsel %vm138, %v131, %v133
  %v142 = vsel %vm138, %v137, %v131
  %s143 = scalar_lea.vmem %s3, 160
  %v144 = vld [vmem:[%s143] sm:$0xff]
  %v145 = vld [vmem:[%s143 + $0x8] sm:$0xff]
  %v146 = vld [vmem:[%s143 + $0x10] sm:$0xff]
  %v147 = vld [vmem:[%s143 + $0x18] sm:$0xff]
  %v148 = vmul.f32 %v141, %v144
  %v149 = vmul.f32 %v140, %v145
  %v150 = vmul.f32 %v139, %v146
  %v151 = vmul.f32 %v142, %v147
  %152 = vst [vmem:[#allocation2 + $0xa0] sm:$0xff] %v148
  %153 = vst [vmem:[#allocation2 + $0xa8] sm:$0xff] %v149
  %154 = vst [vmem:[#allocation2 + $0xb0] sm:$0xff] %v150
  %155 = vst [vmem:[#allocation2 + $0xb8] sm:$0xff] %v151
  %156 = vrot.lane.b32.xlu0 %v17, 113
  %v157 = vpop.permute.xlu0 %156
  %158 = vrot.lane.b32.xlu0 %v18, 113
  %v159 = vpop.permute.xlu0 %158
  %160 = vrot.lane.b32.xlu0 %v19, 113
  %v161 = vpop.permute.xlu0 %160
  %162 = vrot.lane.b32.xlu0 %v20, 113
  %v163 = vpop.permute.xlu0 %162
  %vm164 = vcmp.lt.s32.totalorder %v30, 113
  %v165 = vsel %vm164, %v161, %v163
  %v166 = vsel %vm164, %v159, %v161
  %v167 = vsel %vm164, %v157, %v159
  %v168 = vsel %vm164, %v163, %v157
  %s169 = scalar_lea.vmem %s3, 192
  %v170 = vld [vmem:[%s169] sm:$0xff]
  %v171 = vld [vmem:[%s169 + $0x8] sm:$0xff]
  %v172 = vld [vmem:[%s169 + $0x10] sm:$0xff]
  %v173 = vld [vmem:[%s169 + $0x18] sm:$0xff]
  %v174 = vmul.f32 %v167, %v170
  %v175 = vmul.f32 %v166, %v171
  %v176 = vmul.f32 %v165, %v172
  %v177 = vmul.f32 %v168, %v173
  %178 = vst [vmem:[#allocation2 + $0xc0] sm:$0xff] %v174
  %179 = vst [vmem:[#allocation2 + $0xc8] sm:$0xff] %v175
  %180 = vst [vmem:[#allocation2 + $0xd0] sm:$0xff] %v176
  %181 = vst [vmem:[#allocation2 + $0xd8] sm:$0xff] %v177
  %182 = vrot.lane.b32.xlu0 %v17, 112
  %v183 = vpop.permute.xlu0 %182
  %184 = vrot.lane.b32.xlu0 %v18, 112
  %v185 = vpop.permute.xlu0 %184
  %186 = vrot.lane.b32.xlu0 %v19, 112
  %v187 = vpop.permute.xlu0 %186
  %188 = vrot.lane.b32.xlu0 %v20, 112
  %v189 = vpop.permute.xlu0 %188
  %vm190 = vcmp.lt.s32.totalorder %v30, 112
  %v191 = vsel %vm190, %v187, %v189
  %v192 = vsel %vm190, %v185, %v187
  %v193 = vsel %vm190, %v183, %v185
  %v194 = vsel %vm190, %v189, %v183
  %s195 = scalar_lea.vmem %s3, 224
  %v196 = vld [vmem:[%s195] sm:$0xff]
  %v197 = vld [vmem:[%s195 + $0x8] sm:$0xff]
  %v198 = vld [vmem:[%s195 + $0x10] sm:$0xff]
  %v199 = vld [vmem:[%s195 + $0x18] sm:$0xff]
  %v200 = vmul.f32 %v193, %v196
  %v201 = vmul.f32 %v192, %v197
  %v202 = vmul.f32 %v191, %v198
  %v203 = vmul.f32 %v194, %v199
  %204 = vst [vmem:[#allocation2 + $0xe0] sm:$0xff] %v200
  %205 = vst [vmem:[#allocation2 + $0xe8] sm:$0xff] %v201
  %206 = vst [vmem:[#allocation2 + $0xf0] sm:$0xff] %v202
  %207 = vst [vmem:[#allocation2 + $0xf8] sm:$0xff] %v203
  %208 = vrot.lane.b32.xlu0 %v17, 111
  %v209 = vpop.permute.xlu0 %208
  %210 = vrot.lane.b32.xlu0 %v18, 111
  %v211 = vpop.permute.xlu0 %210
  %212 = vrot.lane.b32.xlu0 %v19, 111
  %v213 = vpop.permute.xlu0 %212
  %214 = vrot.lane.b32.xlu0 %v20, 111
  %v215 = vpop.permute.xlu0 %214
  %vm216 = vcmp.lt.s32.totalorder %v30, 111
  %v217 = vsel %vm216, %v213, %v215
  %v218 = vsel %vm216, %v211, %v213
  %v219 = vsel %vm216, %v209, %v211
  %v220 = vsel %vm216, %v215, %v209
  %s221 = scalar_lea.vmem %s3, 256
  %v222 = vld [vmem:[%s221] sm:$0xff]
  %v223 = vld [vmem:[%s221 + $0x8] sm:$0xff]
  %v224 = vld [vmem:[%s221 + $0x10] sm:$0xff]
  %v225 = vld [vmem:[%s221 + $0x18] sm:$0xff]
  %v226 = vmul.f32 %v219, %v222
  %v227 = vmul.f32 %v218, %v223
  %v228 = vmul.f32 %v217, %v224
  %v229 = vmul.f32 %v220, %v225
  %230 = vst [vmem:[#allocation2 + $0x100] sm:$0xff] %v226
  %231 = vst [vmem:[#allocation2 + $0x108] sm:$0xff] %v227
  %232 = vst [vmem:[#allocation2 + $0x110] sm:$0xff] %v228
  %233 = vst [vmem:[#allocation2 + $0x118] sm:$0xff] %v229
  %v234 = vld [vmem:[%s1] sm:$0xff]
  %v235 = vld [vmem:[#allocation2] sm:$0xff]
  %v236 = vld [vmem:[#allocation2 + $0x8] sm:$0xff]
  %v237 = vld [vmem:[#allocation2 + $0x10] sm:$0xff]
  %v238 = vld [vmem:[#allocation2 + $0x18] sm:$0xff]
  %v239 = vld [vmem:[#allocation2 + $0x20] sm:$0xff]
  %v240 = vld [vmem:[#allocation2 + $0x28] sm:$0xff]
  %v241 = vld [vmem:[#allocation2 + $0x30] sm:$0xff]
  %v242 = vld [vmem:[#allocation2 + $0x38] sm:$0xff]
  %v243 = vld [vmem:[#allocation2 + $0x40] sm:$0xff]
  %v244 = vld [vmem:[#allocation2 + $0x48] sm:$0xff]
  %v245 = vld [vmem:[#allocation2 + $0x50] sm:$0xff]
  %v246 = vld [vmem:[#allocation2 + $0x58] sm:$0xff]
  %v247 = vld [vmem:[#allocation2 + $0x60] sm:$0xff]
  %v248 = vld [vmem:[#allocation2 + $0x68] sm:$0xff]
  %v249 = vld [vmem:[#allocation2 + $0x70] sm:$0xff]
  %v250 = vld [vmem:[#allocation2 + $0x78] sm:$0xff]
  %v251 = vld [vmem:[#allocation2 + $0x80] sm:$0xff]
  %v252 = vld [vmem:[#allocation2 + $0x88] sm:$0xff]
  %v253 = vld [vmem:[#allocation2 + $0x90] sm:$0xff]
  %v254 = vld [vmem:[#allocation2 + $0x98] sm:$0xff]
  %v255 = vld [vmem:[#allocation2 + $0xa0] sm:$0xff]
  %v256 = vld [vmem:[#allocation2 + $0xa8] sm:$0xff]
  %v257 = vld [vmem:[#allocation2 + $0xb0] sm:$0xff]
  %v258 = vld [vmem:[#allocation2 + $0xb8] sm:$0xff]
  %v259 = vld [vmem:[#allocation2 + $0xc0] sm:$0xff]
  %v260 = vld [vmem:[#allocation2 + $0xc8] sm:$0xff]
  %v261 = vld [vmem:[#allocation2 + $0xd0] sm:$0xff]
  %v262 = vld [vmem:[#allocation2 + $0xd8] sm:$0xff]
  %v263 = vld [vmem:[#allocation2 + $0xe0] sm:$0xff]
  %v264 = vld [vmem:[#allocation2 + $0xe8] sm:$0xff]
  %v265 = vld [vmem:[#allocation2 + $0xf0] sm:$0xff]
  %v266 = vld [vmem:[#allocation2 + $0xf8] sm:$0xff]
  %v267 = vld [vmem:[#allocation2 + $0x100] sm:$0xff]
  %v268 = vld [vmem:[#allocation2 + $0x108] sm:$0xff]
  %v269 = vld [vmem:[#allocation2 + $0x110] sm:$0xff]
  %v270 = vld [vmem:[#allocation2 + $0x118] sm:$0xff]
  %vm271 = vcmask 588800
  %v273 = vsel %vm271, %v234, 0
  %275 = vmatprep.subr.mxu0 0.0
  %276 = vmatpush1.msra.mxu0 0.0
  %277 = vmatprep.subr.mxu0 0.0
  %278 = vmatpush1.msra.mxu0 0.0
  %279 = vmatprep.subr.mxu0 0.0
  %280 = vmatpush1.msra.mxu0 0.0
  %281 = vmatprep.subr.mxu0 0.0
  %282 = vmatpush1.msra.mxu0 0.0
  %283 = vmatprep.subr.mxu0 0.0
  %284 = vmatpush1.msra.mxu0 0.0
  %285 = vmatprep.subr.mxu0 0.0
  %286 = vmatpush1.msra.mxu0 0.0
  %287 = vmatprep.subr.mxu0 0.0
  %288 = vmatpush1.msra.mxu0 0.0
  %289 = vmatprep.subr.mxu0 %v268
  %290 = vmatpush1.msra.mxu0 %v267
  %291 = vmatprep.subr.mxu0 %v264
  %292 = vmatpush1.msra.mxu0 %v263
  %293 = vmatprep.subr.mxu0 %v260
  %294 = vmatpush1.msra.mxu0 %v259
  %295 = vmatprep.subr.mxu0 %v256
  %296 = vmatpush1.msra.mxu0 %v255
  %297 = vmatprep.subr.mxu0 %v252
  %298 = vmatpush1.msra.mxu0 %v251
  %299 = vmatprep.subr.mxu0 %v248
  %300 = vmatpush1.msra.mxu0 %v247
  %301 = vmatprep.subr.mxu0 %v244
  %302 = vmatpush1.msra.mxu0 %v243
  %303 = vmatprep.subr.mxu0 %v240
  %304 = vmatpush1.msra.mxu0 %v239
  %305 = vmatprep.subr.mxu0 %v236
  %306 = vmatpush1.msra.mxu0 %v235
  %307 = vmatprep.subr.mxu0 0.0
  %308 = vmatpush2.msra.mxu0 0.0
  %309 = vmatprep.subr.mxu0 0.0
  %310 = vmatpush2.msra.mxu0 0.0
  %311 = vmatprep.subr.mxu0 0.0
  %312 = vmatpush2.msra.mxu0 0.0
  %313 = vmatprep.subr.mxu0 0.0
  %314 = vmatpush2.msra.mxu0 0.0
  %315 = vmatprep.subr.mxu0 0.0
  %316 = vmatpush2.msra.mxu0 0.0
  %317 = vmatprep.subr.mxu0 0.0
  %318 = vmatpush2.msra.mxu0 0.0
  %319 = vmatprep.subr.mxu0 0.0
  %320 = vmatpush2.msra.mxu0 0.0
  %321 = vmatprep.subr.mxu0 0.0
  %322 = vmatpush2.msra.mxu0 0.0
  %323 = vmatprep.subr.mxu0 0.0
  %324 = vmatpush2.msra.mxu0 0.0
  %325 = vmatprep.subr.mxu0 0.0
  %326 = vmatpush2.msra.mxu0 0.0
  %327 = vmatprep.subr.mxu0 0.0
  %328 = vmatpush2.msra.mxu0 0.0
  %329 = vmatprep.subr.mxu0 0.0
  %330 = vmatpush2.msra.mxu0 0.0
  %331 = vmatprep.subr.mxu0 0.0
  %332 = vmatpush2.msra.mxu0 0.0
  %333 = vmatprep.subr.mxu0 0.0
  %334 = vmatpush2.msra.mxu0 0.0
  %335 = vmatprep.subr.mxu0 0.0
  %336 = vmatpush2.msra.mxu0 0.0
  %337 = vmatprep.subr.mxu0 0.0
  %338 = vmatpush2.msra.mxu0 0.0
  %339 = vmatprep.mubr.f32.mxu0 0.0
  %340 = vmatmul.mubr.f32.gmra.mxu0 %v273
  %v341 = vpop.f32.mrf.mxu0
  %v342 = vadd.f32 0.0, %v341
  %v343 = vpop.f32.mrf.mxu0
  %v344 = vadd.f32 0.0, %v343
  %345 = vdwg.mxu0
  %346 = vmatprep.subr.mxu0 0.0
  %347 = vmatpush1.msra.mxu0 0.0
  %348 = vmatprep.subr.mxu0 0.0
  %349 = vmatpush1.msra.mxu0 0.0
  %350 = vmatprep.subr.mxu0 0.0
  %351 = vmatpush1.msra.mxu0 0.0
  %352 = vmatprep.subr.mxu0 0.0
  %353 = vmatpush1.msra.mxu0 0.0
  %354 = vmatprep.subr.mxu0 0.0
  %355 = vmatpush1.msra.mxu0 0.0
  %356 = vmatprep.subr.mxu0 0.0
  %357 = vmatpush1.msra.mxu0 0.0
  %358 = vmatprep.subr.mxu0 0.0
  %359 = vmatpush1.msra.mxu0 0.0
  %360 = vmatprep.subr.mxu0 %v270
  %361 = vmatpush1.msra.mxu0 %v269
  %362 = vmatprep.subr.mxu0 %v266
  %363 = vmatpush1.msra.mxu0 %v265
  %364 = vmatprep.subr.mxu0 %v262
  %365 = vmatpush1.msra.mxu0 %v261
  %366 = vmatprep.subr.mxu0 %v258
  %367 = vmatpush1.msra.mxu0 %v257
  %368 = vmatprep.subr.mxu0 %v254
  %369 = vmatpush1.msra.mxu0 %v253
  %370 = vmatprep.subr.mxu0 %v250
  %371 = vmatpush1.msra.mxu0 %v249
  %372 = vmatprep.subr.mxu0 %v246
  %373 = vmatpush1.msra.mxu0 %v245
  %374 = vmatprep.subr.mxu0 %v242
  %375 = vmatpush1.msra.mxu0 %v241
  %376 = vmatprep.subr.mxu0 %v238
  %377 = vmatpush1.msra.mxu0 %v237
  %378 = vmatprep.subr.mxu0 0.0
  %379 = vmatpush2.msra.mxu0 0.0
  %380 = vmatprep.subr.mxu0 0.0
  %381 = vmatpush2.msra.mxu0 0.0
  %382 = vmatprep.subr.mxu0 0.0
  %383 = vmatpush2.msra.mxu0 0.0
  %384 = vmatprep.subr.mxu0 0.0
  %385 = vmatpush2.msra.mxu0 0.0
  %386 = vmatprep.subr.mxu0 0.0
  %387 = vmatpush2.msra.mxu0 0.0
  %388 = vmatprep.subr.mxu0 0.0
  %389 = vmatpush2.msra.mxu0 0.0
  %390 = vmatprep.subr.mxu0 0.0
  %391 = vmatpush2.msra.mxu0 0.0
  %392 = vmatprep.subr.mxu0 0.0
  %393 = vmatpush2.msra.mxu0 0.0
  %394 = vmatprep.subr.mxu0 0.0
  %395 = vmatpush2.msra.mxu0 0.0
  %396 = vmatprep.subr.mxu0 0.0
  %397 = vmatpush2.msra.mxu0 0.0
  %398 = vmatprep.subr.mxu0 0.0
  %399 = vmatpush2.msra.mxu0 0.0
  %400 = vmatprep.subr.mxu0 0.0
  %401 = vmatpush2.msra.mxu0 0.0
  %402 = vmatprep.subr.mxu0 0.0
  %403 = vmatpush2.msra.mxu0 0.0
  %404 = vmatprep.subr.mxu0 0.0
  %405 = vmatpush2.msra.mxu0 0.0
  %406 = vmatprep.subr.mxu0 0.0
  %407 = vmatpush2.msra.mxu0 0.0
  %408 = vmatprep.subr.mxu0 0.0
  %409 = vmatpush2.msra.mxu0 0.0
  %410 = vmatprep.mubr.f32.mxu0 0.0
  %411 = vmatmul.mubr.f32.gmra.mxu0 %v273
  %v412 = vpop.f32.mrf.mxu0
  %v413 = vadd.f32 0.0, %v412
  %v414 = vpop.f32.mrf.mxu0
  %v415 = vadd.f32 0.0, %v414
  %416 = vdwg.mxu0
  %v417 = vmax.f32 %v342, 0.0
  %v418 = vmax.f32 %v344, 0.0
  %v419 = vmax.f32 %v413, 0.0
  %v420 = vmax.f32 %v415, 0.0
  %421 = vrot.lane.b32.xlu0 %v417, 17
  %v422 = vpop.permute.xlu0 %421
  %423 = vrot.lane.b32.xlu0 %v418, 17
  %v424 = vpop.permute.xlu0 %423
  %425 = vrot.lane.b32.xlu0 %v419, 17
  %v426 = vpop.permute.xlu0 %425
  %427 = vrot.lane.b32.xlu0 %v420, 17
  %v428 = vpop.permute.xlu0 %427
  %v429 = vsel %vm31, %v426, %v428
  %v430 = vsel %vm31, %v424, %v426
  %v431 = vsel %vm31, %v422, %v424
  %v432 = vsel %vm31, %v428, %v422
  %v433 = vld [vmem:[%s3] sm:$0xff]
  %v434 = vld [vmem:[%s3 + $0x8] sm:$0xff]
  %v435 = vld [vmem:[%s3 + $0x10] sm:$0xff]
  %v436 = vld [vmem:[%s3 + $0x18] sm:$0xff]
  %v437 = vmul.f32 %v432, %v433
  %v438 = vmul.f32 %v431, %v434
  %v439 = vmul.f32 %v430, %v435
  %v440 = vmul.f32 %v429, %v436
  %441 = vst [vmem:[#allocation2] sm:$0xff] %v437
  %442 = vst [vmem:[#allocation2 + $0x8] sm:$0xff] %v438
  %443 = vst [vmem:[#allocation2 + $0x10] sm:$0xff] %v439
  %444 = vst [vmem:[#allocation2 + $0x18] sm:$0xff] %v440
  %445 = vrot.lane.b32.xlu0 %v417, 16
  %v446 = vpop.permute.xlu0 %445
  %447 = vrot.lane.b32.xlu0 %v418, 16
  %v448 = vpop.permute.xlu0 %447
  %449 = vrot.lane.b32.xlu0 %v419, 16
  %v450 = vpop.permute.xlu0 %449
  %451 = vrot.lane.b32.xlu0 %v420, 16
  %v452 = vpop.permute.xlu0 %451
  %v453 = vsel %vm56, %v450, %v452
  %v454 = vsel %vm56, %v448, %v450
  %v455 = vsel %vm56, %v446, %v448
  %v456 = vsel %vm56, %v452, %v446
  %v457 = vld [vmem:[%s61] sm:$0xff]
  %v458 = vld [vmem:[%s61 + $0x8] sm:$0xff]
  %v459 = vld [vmem:[%s61 + $0x10] sm:$0xff]
  %v460 = vld [vmem:[%s61 + $0x18] sm:$0xff]
  %v461 = vmul.f32 %v456, %v457
  %v462 = vmul.f32 %v455, %v458
  %v463 = vmul.f32 %v454, %v459
  %v464 = vmul.f32 %v453, %v460
  %465 = vst [vmem:[#allocation2 + $0x20] sm:$0xff] %v461
  %466 = vst [vmem:[#allocation2 + $0x28] sm:$0xff] %v462
  %467 = vst [vmem:[#allocation2 + $0x30] sm:$0xff] %v463
  %468 = vst [vmem:[#allocation2 + $0x38] sm:$0xff] %v464
  %469 = vrot.lane.b32.xlu0 %v417, 15
  %v470 = vpop.permute.xlu0 %469
  %471 = vrot.lane.b32.xlu0 %v418, 15
  %v472 = vpop.permute.xlu0 %471
  %473 = vrot.lane.b32.xlu0 %v419, 15
  %v474 = vpop.permute.xlu0 %473
  %475 = vrot.lane.b32.xlu0 %v420, 15
  %v476 = vpop.permute.xlu0 %475
  %v477 = vsel %vm82, %v474, %v476
  %v478 = vsel %vm82, %v472, %v474
  %v479 = vsel %vm82, %v470, %v472
  %v480 = vsel %vm82, %v476, %v470
  %v481 = vld [vmem:[%s87] sm:$0xff]
  %v482 = vld [vmem:[%s87 + $0x8] sm:$0xff]
  %v483 = vld [vmem:[%s87 + $0x10] sm:$0xff]
  %v484 = vld [vmem:[%s87 + $0x18] sm:$0xff]
  %v485 = vmul.f32 %v480, %v481
  %v486 = vmul.f32 %v479, %v482
  %v487 = vmul.f32 %v478, %v483
  %v488 = vmul.f32 %v477, %v484
  %489 = vst [vmem:[#allocation2 + $0x40] sm:$0xff] %v485
  %490 = vst [vmem:[#allocation2 + $0x48] sm:$0xff] %v486
  %491 = vst [vmem:[#allocation2 + $0x50] sm:$0xff] %v487
  %492 = vst [vmem:[#allocation2 + $0x58] sm:$0xff] %v488
  %493 = vrot.lane.b32.xlu0 %v417, 1
  %v494 = vpop.permute.xlu0 %493
  %495 = vrot.lane.b32.xlu0 %v418, 1
  %v496 = vpop.permute.xlu0 %495
  %497 = vrot.lane.b32.xlu0 %v419, 1
  %v498 = vpop.permute.xlu0 %497
  %499 = vrot.lane.b32.xlu0 %v420, 1
  %v500 = vpop.permute.xlu0 %499
  %v501 = vsel %vm108, %v498, %v500
  %v502 = vsel %vm108, %v496, %v498
  %v503 = vsel %vm108, %v494, %v496
  %v504 = vsel %vm108, %v500, %v494
  %v505 = vld [vmem:[%s113] sm:$0xff]
  %v506 = vld [vmem:[%s113 + $0x8] sm:$0xff]
  %v507 = vld [vmem:[%s113 + $0x10] sm:$0xff]
  %v508 = vld [vmem:[%s113 + $0x18] sm:$0xff]
  %v509 = vmul.f32 %v504, %v505
  %v510 = vmul.f32 %v503, %v506
  %v511 = vmul.f32 %v502, %v507
  %v512 = vmul.f32 %v501, %v508
  %513 = vst [vmem:[#allocation2 + $0x60] sm:$0xff] %v509
  %514 = vst [vmem:[#allocation2 + $0x68] sm:$0xff] %v510
  %515 = vst [vmem:[#allocation2 + $0x70] sm:$0xff] %v511
  %516 = vst [vmem:[#allocation2 + $0x78] sm:$0xff] %v512
  %517 = vst [vmem:[#allocation2 + $0x80] sm:$0xff] %v417
  %518 = vst [vmem:[#allocation2 + $0x88] sm:$0xff] %v418
  %519 = vst [vmem:[#allocation2 + $0x90] sm:$0xff] %v419
  %520 = vst [vmem:[#allocation2 + $0x98] sm:$0xff] %v420
  %521 = vrot.lane.b32.xlu0 %v417, 127
  %v522 = vpop.permute.xlu0 %521
  %523 = vrot.lane.b32.xlu0 %v418, 127
  %v524 = vpop.permute.xlu0 %523
  %525 = vrot.lane.b32.xlu0 %v419, 127
  %v526 = vpop.permute.xlu0 %525
  %527 = vrot.lane.b32.xlu0 %v420, 127
  %v528 = vpop.permute.xlu0 %527
  %v529 = vsel %vm138, %v526, %v528
  %v530 = vsel %vm138, %v524, %v526
  %v531 = vsel %vm138, %v522, %v524
  %v532 = vsel %vm138, %v528, %v522
  %v533 = vld [vmem:[%s143] sm:$0xff]
  %v534 = vld [vmem:[%s143 + $0x8] sm:$0xff]
  %v535 = vld [vmem:[%s143 + $0x10] sm:$0xff]
  %v536 = vld [vmem:[%s143 + $0x18] sm:$0xff]
  %v537 = vmul.f32 %v531, %v533
  %v538 = vmul.f32 %v530, %v534
  %v539 = vmul.f32 %v529, %v535
  %v540 = vmul.f32 %v532, %v536
  %541 = vst [vmem:[#allocation2 + $0xa0] sm:$0xff] %v537
  %542 = vst [vmem:[#allocation2 + $0xa8] sm:$0xff] %v538
  %543 = vst [vmem:[#allocation2 + $0xb0] sm:$0xff] %v539
  %544 = vst [vmem:[#allocation2 + $0xb8] sm:$0xff] %v540
  %545 = vrot.lane.b32.xlu0 %v417, 113
  %v546 = vpop.permute.xlu0 %545
  %547 = vrot.lane.b32.xlu0 %v418, 113
  %v548 = vpop.permute.xlu0 %547
  %549 = vrot.lane.b32.xlu0 %v419, 113
  %v550 = vpop.permute.xlu0 %549
  %551 = vrot.lane.b32.xlu0 %v420, 113
  %v552 = vpop.permute.xlu0 %551
  %v553 = vsel %vm164, %v550, %v552
  %v554 = vsel %vm164, %v548, %v550
  %v555 = vsel %vm164, %v546, %v548
  %v556 = vsel %vm164, %v552, %v546
  %v557 = vld [vmem:[%s169] sm:$0xff]
  %v558 = vld [vmem:[%s169 + $0x8] sm:$0xff]
  %v559 = vld [vmem:[%s169 + $0x10] sm:$0xff]
  %v560 = vld [vmem:[%s169 + $0x18] sm:$0xff]
  %v561 = vmul.f32 %v555, %v557
  %v562 = vmul.f32 %v554, %v558
  %v563 = vmul.f32 %v553, %v559
  %v564 = vmul.f32 %v556, %v560
  %565 = vst [vmem:[#allocation2 + $0xc0] sm:$0xff] %v561
  %566 = vst [vmem:[#allocation2 + $0xc8] sm:$0xff] %v562
  %567 = vst [vmem:[#allocation2 + $0xd0] sm:$0xff] %v563
  %568 = vst [vmem:[#allocation2 + $0xd8] sm:$0xff] %v564
  %569 = vrot.lane.b32.xlu0 %v417, 112
  %v570 = vpop.permute.xlu0 %569
  %571 = vrot.lane.b32.xlu0 %v418, 112
  %v572 = vpop.permute.xlu0 %571
  %573 = vrot.lane.b32.xlu0 %v419, 112
  %v574 = vpop.permute.xlu0 %573
  %575 = vrot.lane.b32.xlu0 %v420, 112
  %v576 = vpop.permute.xlu0 %575
  %v577 = vsel %vm190, %v574, %v576
  %v578 = vsel %vm190, %v572, %v574
  %v579 = vsel %vm190, %v570, %v572
  %v580 = vsel %vm190, %v576, %v570
  %v581 = vld [vmem:[%s195] sm:$0xff]
  %v582 = vld [vmem:[%s195 + $0x8] sm:$0xff]
  %v583 = vld [vmem:[%s195 + $0x10] sm:$0xff]
  %v584 = vld [vmem:[%s195 + $0x18] sm:$0xff]
  %v585 = vmul.f32 %v579, %v581
  %v586 = vmul.f32 %v578, %v582
  %v587 = vmul.f32 %v577, %v583
  %v588 = vmul.f32 %v580, %v584
  %589 = vst [vmem:[#allocation2 + $0xe0] sm:$0xff] %v585
  %590 = vst [vmem:[#allocation2 + $0xe8] sm:$0xff] %v586
  %591 = vst [vmem:[#allocation2 + $0xf0] sm:$0xff] %v587
  %592 = vst [vmem:[#allocation2 + $0xf8] sm:$0xff] %v588
  %593 = vrot.lane.b32.xlu0 %v417, 111
  %v594 = vpop.permute.xlu0 %593
  %595 = vrot.lane.b32.xlu0 %v418, 111
  %v596 = vpop.permute.xlu0 %595
  %597 = vrot.lane.b32.xlu0 %v419, 111
  %v598 = vpop.permute.xlu0 %597
  %599 = vrot.lane.b32.xlu0 %v420, 111
  %v600 = vpop.permute.xlu0 %599
  %v601 = vsel %vm216, %v598, %v600
  %v602 = vsel %vm216, %v596, %v598
  %v603 = vsel %vm216, %v594, %v596
  %v604 = vsel %vm216, %v600, %v594
  %v605 = vld [vmem:[%s221] sm:$0xff]
  %v606 = vld [vmem:[%s221 + $0x8] sm:$0xff]
  %v607 = vld [vmem:[%s221 + $0x10] sm:$0xff]
  %v608 = vld [vmem:[%s221 + $0x18] sm:$0xff]
  %v609 = vmul.f32 %v603, %v605
  %v610 = vmul.f32 %v602, %v606
  %v611 = vmul.f32 %v601, %v607
  %v612 = vmul.f32 %v604, %v608
  %613 = vst [vmem:[#allocation2 + $0x100] sm:$0xff] %v609
  %614 = vst [vmem:[#allocation2 + $0x108] sm:$0xff] %v610
  %615 = vst [vmem:[#allocation2 + $0x110] sm:$0xff] %v611
  %616 = vst [vmem:[#allocation2 + $0x118] sm:$0xff] %v612
  %v617 = vld [vmem:[%s2] sm:$0xff]
  %v618 = vld [vmem:[#allocation2] sm:$0xff]
  %v619 = vld [vmem:[#allocation2 + $0x8] sm:$0xff]
  %v620 = vld [vmem:[#allocation2 + $0x10] sm:$0xff]
  %v621 = vld [vmem:[#allocation2 + $0x18] sm:$0xff]
  %v622 = vld [vmem:[#allocation2 + $0x20] sm:$0xff]
  %v623 = vld [vmem:[#allocation2 + $0x28] sm:$0xff]
  %v624 = vld [vmem:[#allocation2 + $0x30] sm:$0xff]
  %v625 = vld [vmem:[#allocation2 + $0x38] sm:$0xff]
  %v626 = vld [vmem:[#allocation2 + $0x40] sm:$0xff]
  %v627 = vld [vmem:[#allocation2 + $0x48] sm:$0xff]
  %v628 = vld [vmem:[#allocation2 + $0x50] sm:$0xff]
  %v629 = vld [vmem:[#allocation2 + $0x58] sm:$0xff]
  %v630 = vld [vmem:[#allocation2 + $0x60] sm:$0xff]
  %v631 = vld [vmem:[#allocation2 + $0x68] sm:$0xff]
  %v632 = vld [vmem:[#allocation2 + $0x70] sm:$0xff]
  %v633 = vld [vmem:[#allocation2 + $0x78] sm:$0xff]
  %v634 = vld [vmem:[#allocation2 + $0x80] sm:$0xff]
  %v635 = vld [vmem:[#allocation2 + $0x88] sm:$0xff]
  %v636 = vld [vmem:[#allocation2 + $0x90] sm:$0xff]
  %v637 = vld [vmem:[#allocation2 + $0x98] sm:$0xff]
  %v638 = vld [vmem:[#allocation2 + $0xa0] sm:$0xff]
  %v639 = vld [vmem:[#allocation2 + $0xa8] sm:$0xff]
  %v640 = vld [vmem:[#allocation2 + $0xb0] sm:$0xff]
  %v641 = vld [vmem:[#allocation2 + $0xb8] sm:$0xff]
  %v642 = vld [vmem:[#allocation2 + $0xc0] sm:$0xff]
  %v643 = vld [vmem:[#allocation2 + $0xc8] sm:$0xff]
  %v644 = vld [vmem:[#allocation2 + $0xd0] sm:$0xff]
  %v645 = vld [vmem:[#allocation2 + $0xd8] sm:$0xff]
  %v646 = vld [vmem:[#allocation2 + $0xe0] sm:$0xff]
  %v647 = vld [vmem:[#allocation2 + $0xe8] sm:$0xff]
  %v648 = vld [vmem:[#allocation2 + $0xf0] sm:$0xff]
  %v649 = vld [vmem:[#allocation2 + $0xf8] sm:$0xff]
  %v650 = vld [vmem:[#allocation2 + $0x100] sm:$0xff]
  %v651 = vld [vmem:[#allocation2 + $0x108] sm:$0xff]
  %v652 = vld [vmem:[#allocation2 + $0x110] sm:$0xff]
  %v653 = vld [vmem:[#allocation2 + $0x118] sm:$0xff]
  %v655 = vsel %vm271, %v617, 0
  %657 = vmatprep.subr.mxu0 0.0
  %658 = vmatpush1.msra.mxu0 0.0
  %659 = vmatprep.subr.mxu0 0.0
  %660 = vmatpush1.msra.mxu0 0.0
  %661 = vmatprep.subr.mxu0 0.0
  %662 = vmatpush1.msra.mxu0 0.0
  %663 = vmatprep.subr.mxu0 0.0
  %664 = vmatpush1.msra.mxu0 0.0
  %665 = vmatprep.subr.mxu0 0.0
  %666 = vmatpush1.msra.mxu0 0.0
  %667 = vmatprep.subr.mxu0 0.0
  %668 = vmatpush1.msra.mxu0 0.0
  %669 = vmatprep.subr.mxu0 0.0
  %670 = vmatpush1.msra.mxu0 0.0
  %671 = vmatprep.subr.mxu0 %v651
  %672 = vmatpush1.msra.mxu0 %v650
  %673 = vmatprep.subr.mxu0 %v647
  %674 = vmatpush1.msra.mxu0 %v646
  %675 = vmatprep.subr.mxu0 %v643
  %676 = vmatpush1.msra.mxu0 %v642
  %677 = vmatprep.subr.mxu0 %v639
  %678 = vmatpush1.msra.mxu0 %v638
  %679 = vmatprep.subr.mxu0 %v635
  %680 = vmatpush1.msra.mxu0 %v634
  %681 = vmatprep.subr.mxu0 %v631
  %682 = vmatpush1.msra.mxu0 %v630
  %683 = vmatprep.subr.mxu0 %v627
  %684 = vmatpush1.msra.mxu0 %v626
  %685 = vmatprep.subr.mxu0 %v623
  %686 = vmatpush1.msra.mxu0 %v622
  %687 = vmatprep.subr.mxu0 %v619
  %688 = vmatpush1.msra.mxu0 %v618
  %689 = vmatprep.subr.mxu0 0.0
  %690 = vmatpush2.msra.mxu0 0.0
  %691 = vmatprep.subr.mxu0 0.0
  %692 = vmatpush2.msra.mxu0 0.0
  %693 = vmatprep.subr.mxu0 0.0
  %694 = vmatpush2.msra.mxu0 0.0
  %695 = vmatprep.subr.mxu0 0.0
  %696 = vmatpush2.msra.mxu0 0.0
  %697 = vmatprep.subr.mxu0 0.0
  %698 = vmatpush2.msra.mxu0 0.0
  %699 = vmatprep.subr.mxu0 0.0
  %700 = vmatpush2.msra.mxu0 0.0
  %701 = vmatprep.subr.mxu0 0.0
  %702 = vmatpush2.msra.mxu0 0.0
  %703 = vmatprep.subr.mxu0 0.0
  %704 = vmatpush2.msra.mxu0 0.0
  %705 = vmatprep.subr.mxu0 0.0
  %706 = vmatpush2.msra.mxu0 0.0
  %707 = vmatprep.subr.mxu0 0.0
  %708 = vmatpush2.msra.mxu0 0.0
  %709 = vmatprep.subr.mxu0 0.0
  %710 = vmatpush2.msra.mxu0 0.0
  %711 = vmatprep.subr.mxu0 0.0
  %712 = vmatpush2.msra.mxu0 0.0
  %713 = vmatprep.subr.mxu0 0.0
  %714 = vmatpush2.msra.mxu0 0.0
  %715 = vmatprep.subr.mxu0 0.0
  %716 = vmatpush2.msra.mxu0 0.0
  %717 = vmatprep.subr.mxu0 0.0
  %718 = vmatpush2.msra.mxu0 0.0
  %719 = vmatprep.subr.mxu0 0.0
  %720 = vmatpush2.msra.mxu0 0.0
  %721 = vmatprep.mubr.f32.mxu0 0.0
  %722 = vmatmul.mubr.f32.gmra.mxu0 %v655
  %v723 = vpop.f32.mrf.mxu0
  %v724 = vadd.f32 0.0, %v723
  %v725 = vpop.f32.mrf.mxu0
  %v726 = vadd.f32 0.0, %v725
  %727 = vdwg.mxu0
  %728 = vmatprep.subr.mxu0 0.0
  %729 = vmatpush1.msra.mxu0 0.0
  %730 = vmatprep.subr.mxu0 0.0
  %731 = vmatpush1.msra.mxu0 0.0
  %732 = vmatprep.subr.mxu0 0.0
  %733 = vmatpush1.msra.mxu0 0.0
  %734 = vmatprep.subr.mxu0 0.0
  %735 = vmatpush1.msra.mxu0 0.0
  %736 = vmatprep.subr.mxu0 0.0
  %737 = vmatpush1.msra.mxu0 0.0
  %738 = vmatprep.subr.mxu0 0.0
  %739 = vmatpush1.msra.mxu0 0.0
  %740 = vmatprep.subr.mxu0 0.0
  %741 = vmatpush1.msra.mxu0 0.0
  %742 = vmatprep.subr.mxu0 %v653
  %743 = vmatpush1.msra.mxu0 %v652
  %744 = vmatprep.subr.mxu0 %v649
  %745 = vmatpush1.msra.mxu0 %v648
  %746 = vmatprep.subr.mxu0 %v645
  %747 = vmatpush1.msra.mxu0 %v644
  %748 = vmatprep.subr.mxu0 %v641
  %749 = vmatpush1.msra.mxu0 %v640
  %750 = vmatprep.subr.mxu0 %v637
  %751 = vmatpush1.msra.mxu0 %v636
  %752 = vmatprep.subr.mxu0 %v633
  %753 = vmatpush1.msra.mxu0 %v632
  %754 = vmatprep.subr.mxu0 %v629
  %755 = vmatpush1.msra.mxu0 %v628
  %756 = vmatprep.subr.mxu0 %v625
  %757 = vmatpush1.msra.mxu0 %v624
  %758 = vmatprep.subr.mxu0 %v621
  %759 = vmatpush1.msra.mxu0 %v620
  %760 = vmatprep.subr.mxu0 0.0
  %761 = vmatpush2.msra.mxu0 0.0
  %762 = vmatprep.subr.mxu0 0.0
  %763 = vmatpush2.msra.mxu0 0.0
  %764 = vmatprep.subr.mxu0 0.0
  %765 = vmatpush2.msra.mxu0 0.0
  %766 = vmatprep.subr.mxu0 0.0
  %767 = vmatpush2.msra.mxu0 0.0
  %768 = vmatprep.subr.mxu0 0.0
  %769 = vmatpush2.msra.mxu0 0.0
  %770 = vmatprep.subr.mxu0 0.0
  %771 = vmatpush2.msra.mxu0 0.0
  %772 = vmatprep.subr.mxu0 0.0
  %773 = vmatpush2.msra.mxu0 0.0
  %774 = vmatprep.subr.mxu0 0.0
  %775 = vmatpush2.msra.mxu0 0.0
  %776 = vmatprep.subr.mxu0 0.0
  %777 = vmatpush2.msra.mxu0 0.0
  %778 = vmatprep.subr.mxu0 0.0
  %779 = vmatpush2.msra.mxu0 0.0
  %780 = vmatprep.subr.mxu0 0.0
  %781 = vmatpush2.msra.mxu0 0.0
  %782 = vmatprep.subr.mxu0 0.0
  %783 = vmatpush2.msra.mxu0 0.0
  %784 = vmatprep.subr.mxu0 0.0
  %785 = vmatpush2.msra.mxu0 0.0
  %786 = vmatprep.subr.mxu0 0.0
  %787 = vmatpush2.msra.mxu0 0.0
  %788 = vmatprep.subr.mxu0 0.0
  %789 = vmatpush2.msra.mxu0 0.0
  %790 = vmatprep.subr.mxu0 0.0
  %791 = vmatpush2.msra.mxu0 0.0
  %792 = vmatprep.mubr.f32.mxu0 0.0
  %793 = vmatmul.mubr.f32.gmra.mxu0 %v655
  %v794 = vpop.f32.mrf.mxu0
  %v795 = vadd.f32 0.0, %v794
  %v796 = vpop.f32.mrf.mxu0
  %v797 = vadd.f32 0.0, %v796
  %798 = vdwg.mxu0
  %799 = vst [vmem:[%s4] sm:$0xff] %v724
  %800 = vst [vmem:[%s4 + $0x8] sm:$0xff] %v726
  %801 = vst [vmem:[%s4 + $0x10] sm:$0xff] %v795
  %802 = vst [vmem:[%s4 + $0x18] sm:$0xff] %v797
  // Predicated region
  $region18: #{d_forward.1} parent=0 // pred_check
    _
  $region19: #{d_forward.1} parent=0 // pred_check_branch
    %804 = sbr.rel (0) target = $region21
  $region20: #{d_forward.1} parent=0 // pred_region
    _
  $region21: #{d_forward.1} parent=0 // pred_fallthru
    _
  // Predicated region
  $region22: #{d_forward.1} parent=0 // pred_check
    _
  $region23: #{d_forward.1} parent=0 // pred_check_branch
    %806 = sbr.rel (0) target = $region25
  $region24: #{d_forward.1} parent=0 // pred_region
    _
  $region25: #{d_forward.1} parent=0 // pred_fallthru
    _

</llo_original>
